<compile_context>
chip_gen: v5e
topology: v5e:2x2
jax: 0.10.0
libtpu: 0.0.40
codegen_flags: <defaults>
</compile_context>

<pallas_src>
import jax
import jax.numpy as jnp
from jax.experimental import pallas as pl
from jax.experimental.pallas import tpu as pltpu

SCALE_FACTOR = 8.0
DROPOUT_P = 0.75


def _sdpa_dropout_kernel(q_ref, k_ref, v_ref, u_ref, o_ref):
    """One grid step processes a (bh_block, ...) slab of heads."""
    # Fold 1/scale into q: L*D multiplies instead of L*S divides.
    q = q_ref[...].astype(jnp.float32) * (1.0 / SCALE_FACTOR)
    k = k_ref[...].astype(jnp.float32)
    v = v_ref[...].astype(jnp.float32)

    # Batched q @ k^T contracting the last dims (no explicit transpose).
    s = jnp.einsum("bld,bsd->bls", q, k, preferred_element_type=jnp.float32)

    # Numerically stable softmax along the key axis.
    m = jnp.max(s, axis=-1, keepdims=True)
    e = jnp.exp(s - m)
    denom = jnp.sum(e, axis=-1, keepdims=True)
    # Approx reciprocal (EUP); fold the 1/(1-p) dropout rescale into the
    # (b, L, 1) reciprocal instead of the (b, L, S) probability matrix.
    inv = pl.reciprocal(denom, approx=True) * (1.0 / (1.0 - DROPOUT_P))

    # Inverted dropout with keep-prob (1 - p); uniform draws come from outside.
    keep = u_ref[...] >= DROPOUT_P
    dropped = jnp.where(keep, e * inv, 0.0)

    # dropped @ v -> (b, L, Dv)
    o = jnp.einsum("bls,bsv->blv", dropped, v, preferred_element_type=jnp.float32)
    o_ref[...] = o.astype(o_ref.dtype)


def sdpa_dropout(query, key, value, dropout_rng, *, bh_block=None):
    """query (BH, L, D), key (BH, S, D), value (BH, S, Dv) -> (BH, L, Dv)."""
    BH, L, D = query.shape
    _, S, _ = key.shape
    Dv = value.shape[-1]

    # One uniform [0, 1) draw per attention score, generated once up front.
    u = jax.random.uniform(dropout_rng, (BH, L, S), dtype=jnp.float32)

    if bh_block is None:
        bh_block = BH                      # batch every head into one grid step
    assert BH % bh_block == 0
    grid = (BH // bh_block,)

    # TODO(synk): for realistic L/S, switch to flash-style KV tiling (online
    # softmax) and a lane-dense output slab; unnecessary at these toy sizes.
    return pl.pallas_call(
        _sdpa_dropout_kernel,
        out_shape=jax.ShapeDtypeStruct((BH, L, Dv), query.dtype),
        grid=grid,
        in_specs=[
            pl.BlockSpec((bh_block, L, D), lambda b: (b, 0, 0)),
            pl.BlockSpec((bh_block, S, D), lambda b: (b, 0, 0)),
            pl.BlockSpec((bh_block, S, Dv), lambda b: (b, 0, 0)),
            pl.BlockSpec((bh_block, L, S), lambda b: (b, 0, 0)),
        ],
        out_specs=pl.BlockSpec((bh_block, L, Dv), lambda b: (b, 0, 0)),
        compiler_params=pltpu.CompilerParams(
            # No stateful PRNG in the kernel -> steps are order-independent,
            # so v7x may shard the head axis across its two TensorCores.
            dimension_semantics=("parallel",),
        ),
    )(query, key, value, u)


if __name__ == "__main__":
    # Small, self-consistent shapes implied by the forward pass:
    #   q: (B, H, L, D), k: (B, H, S, D), v: (B, H, S, Dv)
    B, H, L, S, D, Dv = 2, 2, 8, 16, 32, 8

    root = jax.random.PRNGKey(0)
    kq, kk, kv, kd = jax.random.split(root, 4)
    query = jax.random.normal(kq, (B, H, L, D), dtype=jnp.float32)
    key = jax.random.normal(kk, (B, H, S, D), dtype=jnp.float32)
    value = jax.random.normal(kv, (B, H, S, Dv), dtype=jnp.float32)

    # Flatten (B, H) -> BH for the kernel, unflatten afterwards.
    q2 = query.reshape(B * H, L, D)
    k2 = key.reshape(B * H, S, D)
    v2 = value.reshape(B * H, S, Dv)

    out = sdpa_dropout(q2, k2, v2, kd).reshape(B, H, L, Dv)
    jax.block_until_ready(out)

    # Pure-JAX reference using the identical dropout mask.
    u = jax.random.uniform(kd, (B * H, L, S), dtype=jnp.float32)
    hi = jax.lax.Precision.HIGHEST
    qk = jnp.einsum("bld,bsd->bls", q2, k2, precision=hi) / SCALE_FACTOR
    probs = jax.nn.softmax(qk, axis=-1)
    dropped_ref = jnp.where(u >= DROPOUT_P, probs / (1.0 - DROPOUT_P), 0.0)
    ref = jnp.einsum("bls,bsv->blv", dropped_ref, v2, precision=hi).reshape(
        B, H, L, Dv
    )

    assert out.shape == (B, H, L, Dv)
    assert out.dtype == jnp.float32
    assert bool(jnp.all(jnp.isfinite(out)))
    # Loose tolerance: approx reciprocal (~bf16 precision) in the kernel.
    assert bool(jnp.allclose(out, ref, rtol=5e-2, atol=5e-2))

    print("KERNEL_OK")
</pallas_src>

<mosaic_0001>
module attributes {stable_mosaic.version = 11 : i64} {
  func.func @_sdpa_dropout_kernel(%arg0: i32, %arg1: memref<4x8x32xf32, #tpu.memory_space<vmem>>, %arg2: memref<4x16x32xf32, #tpu.memory_space<vmem>>, %arg3: memref<4x16x8xf32, #tpu.memory_space<vmem>>, %arg4: memref<4x8x16xf32, #tpu.memory_space<vmem>>, %arg5: memref<4x8x8xf32, #tpu.memory_space<vmem>>) attributes {dimension_semantics = [#tpu.dimension_semantics<parallel>], iteration_bounds = array<i64: 1>, scalar_prefetch = 0 : i64, scratch_operands = 0 : i64, tpu.core_type = #tpu.core_type<tc>, window_params = [{transform_indices = @transform_0, window_bounds = array<i64: 4, 8, 32>}, {transform_indices = @transform_1, window_bounds = array<i64: 4, 16, 32>}, {transform_indices = @transform_2, window_bounds = array<i64: 4, 16, 8>}, {transform_indices = @transform_3, window_bounds = array<i64: 4, 8, 16>}, {transform_indices = @transform_4, window_bounds = array<i64: 4, 8, 8>}]} {
    %c0 = arith.constant 0 : index
    %c0_0 = arith.constant 0 : index
    %c0_1 = arith.constant 0 : index
    %0 = vector.load %arg1[%c0, %c0_0, %c0_1] : memref<4x8x32xf32, #tpu.memory_space<vmem>>, vector<4x8x32xf32>
    %cst = arith.constant 1.250000e-01 : f32
    %1 = vector.broadcast %cst : f32 to vector<4x8x32xf32>
    %2 = arith.mulf %0, %1 : vector<4x8x32xf32>
    %c0_2 = arith.constant 0 : index
    %c0_3 = arith.constant 0 : index
    %c0_4 = arith.constant 0 : index
    %3 = vector.load %arg2[%c0_2, %c0_3, %c0_4] : memref<4x16x32xf32, #tpu.memory_space<vmem>>, vector<4x16x32xf32>
    %c0_5 = arith.constant 0 : index
    %c0_6 = arith.constant 0 : index
    %c0_7 = arith.constant 0 : index
    %4 = vector.load %arg3[%c0_5, %c0_6, %c0_7] : memref<4x16x8xf32, #tpu.memory_space<vmem>>, vector<4x16x8xf32>
    "tpu.trace_start"() <{level = 10 : i32, message = "bld,bsd->bls"}> : () -> ()
    %cst_8 = arith.constant dense<0.000000e+00> : vector<4x8x16xf32>
    %5 = tpu.matmul %2, %3, %cst_8 {dimension_numbers = #tpu.dot_dimension_numbers<[2], [2], [1], [1], [0, 0, 0, 1, 1, 1], [0], [0]>} : vector<4x8x32xf32>, vector<4x16x32xf32>, vector<4x8x16xf32> -> vector<4x8x16xf32>
    "tpu.trace_stop"() : () -> ()
    %cst_9 = arith.constant dense<0xFF800000> : vector<4x8xf32>
    %6 = vector.multi_reduction <maximumf>, %5, %cst_9 [2] : vector<4x8x16xf32> to vector<4x8xf32>
    %7 = vector.shape_cast %6 : vector<4x8xf32> to vector<4x8x1xf32>
    %8 = vector.broadcast %7 : vector<4x8x1xf32> to vector<4x8x16xf32>
    %9 = arith.subf %5, %8 : vector<4x8x16xf32>
    %10 = math.exp %9 : vector<4x8x16xf32>
    %cst_10 = arith.constant dense<0.000000e+00> : vector<4x8xf32>
    %11 = vector.multi_reduction <add>, %10, %cst_10 [2] : vector<4x8x16xf32> to vector<4x8xf32>
    %12 = vector.shape_cast %11 : vector<4x8xf32> to vector<4x8x1xf32>
    %13 = tpu.reciprocal %12 {approx = true} : vector<4x8x1xf32> -> vector<4x8x1xf32>
    %cst_11 = arith.constant 4.000000e+00 : f32
    %14 = vector.broadcast %cst_11 : f32 to vector<4x8x1xf32>
    %15 = arith.mulf %13, %14 : vector<4x8x1xf32>
    %c0_12 = arith.constant 0 : index
    %c0_13 = arith.constant 0 : index
    %c0_14 = arith.constant 0 : index
    %16 = vector.load %arg4[%c0_12, %c0_13, %c0_14] : memref<4x8x16xf32, #tpu.memory_space<vmem>>, vector<4x8x16xf32>
    %cst_15 = arith.constant 7.500000e-01 : f32
    %17 = vector.broadcast %cst_15 : f32 to vector<4x8x16xf32>
    %18 = arith.cmpf oge, %16, %17 : vector<4x8x16xf32>
    %19 = vector.broadcast %15 : vector<4x8x1xf32> to vector<4x8x16xf32>
    %20 = arith.mulf %10, %19 : vector<4x8x16xf32>
    %cst_16 = arith.constant 0.000000e+00 : f32
    %21 = vector.broadcast %cst_16 : f32 to vector<4x8x16xf32>
    %22 = arith.select %18, %20, %21 : vector<4x8x16xi1>, vector<4x8x16xf32>
    "tpu.trace_start"() <{level = 10 : i32, message = "bls,bsv->blv"}> : () -> ()
    %cst_17 = arith.constant dense<0.000000e+00> : vector<4x8x8xf32>
    %23 = tpu.matmul %22, %4, %cst_17 {dimension_numbers = #tpu.dot_dimension_numbers<[2], [1], [1], [2], [0, 0, 0, 1, 1, 2], [0], [0]>} : vector<4x8x16xf32>, vector<4x16x8xf32>, vector<4x8x8xf32> -> vector<4x8x8xf32>
    "tpu.trace_stop"() : () -> ()
    %c0_18 = arith.constant 0 : index
    %c0_19 = arith.constant 0 : index
    %c0_20 = arith.constant 0 : index
    %24 = vector.load %arg5[%c0_18, %c0_19, %c0_20] : memref<4x8x8xf32, #tpu.memory_space<vmem>>, vector<4x8x8xf32>
    tpu.vector_store %arg5[%c0_18, %c0_19, %c0_20], %23 {strides = array<i32>} : memref<4x8x8xf32, #tpu.memory_space<vmem>>, vector<4x8x8xf32>,
    return
  }
  func.func @transform_0(%arg0: i32) -> (i32, i32, i32) {
    %c0_i32 = arith.constant 0 : i32
    %c0_i32_0 = arith.constant 0 : i32
    %c0_i32_1 = arith.constant 0 : i32
    return %arg0, %c0_i32, %c0_i32_0 : i32, i32, i32
  }
  func.func @transform_1(%arg0: i32) -> (i32, i32, i32) {
    %c0_i32 = arith.constant 0 : i32
    %c0_i32_0 = arith.constant 0 : i32
    %c0_i32_1 = arith.constant 0 : i32
    return %arg0, %c0_i32, %c0_i32_0 : i32, i32, i32
  }
  func.func @transform_2(%arg0: i32) -> (i32, i32, i32) {
    %c0_i32 = arith.constant 0 : i32
    %c0_i32_0 = arith.constant 0 : i32
    %c0_i32_1 = arith.constant 0 : i32
    return %arg0, %c0_i32, %c0_i32_0 : i32, i32, i32
  }
  func.func @transform_3(%arg0: i32) -> (i32, i32, i32) {
    %c0_i32 = arith.constant 0 : i32
    %c0_i32_0 = arith.constant 0 : i32
    %c0_i32_1 = arith.constant 0 : i32
    return %arg0, %c0_i32, %c0_i32_0 : i32, i32, i32
  }
  func.func @transform_4(%arg0: i32) -> (i32, i32, i32) {
    %c0_i32 = arith.constant 0 : i32
    %c0_i32_0 = arith.constant 0 : i32
    %c0_i32_1 = arith.constant 0 : i32
    return %arg0, %c0_i32, %c0_i32_0 : i32, i32, i32
  }
}

</mosaic_0001>

<llo_original>
// kernel: tpu_custom_call.1
$region0: #{tpu_custom_call.1}
  #allocation0 [shape = 'u32[]', space=smem, size = 0x4, offset = 0x4, fixed_abs, tag = 'smem constant byte address 0x4 - core index']
  #allocation1 [shape = 'u32[72,128]{1,0:T(1,128)}', space=vmem, size = 0x9000, scoped, tag = 'internal scratch']
  %s0 = inlined_call_operand.vmem [shape: f32[4,8,32], index: 0, kind: input, shape index: {}]
  %s1 = inlined_call_operand.vmem [shape: f32[4,16,32], index: 1, kind: input, shape index: {}]
  %s2 = inlined_call_operand.vmem [shape: f32[4,16,8], index: 2, kind: input, shape index: {}]
  %s3 = inlined_call_operand.hbm [shape: f32[4,8,16], index: 3, kind: input, shape index: {}]
  %s4 = inlined_call_operand.hbm [shape: f32[4,8,8], index: 4, kind: output, shape index: {}]
  %s5 = sld [smem:[#allocation0]]
  $region30: #{tpu_custom_call.1} parent=0
    _
  %s7 = ssub.s32 1, %s5
  %s8 = scalar_select 0, %s7, %s5
  $region1: #{tpu_custom_call.1} parent=0
    #allocation2 [shape = 'u8[16384]{0}', space=vmem, size = 0x4000, scoped, tag = 'input window, operand 3, single buffered']
    #allocation3 [shape = 's32[1]{0}', space=sflag, size = 0x4, scoped, tag = 'scoped memory for tpu_custom_call.1']
    #allocation4 [shape = 's32[1]{0}', space=sflag, size = 0x4, scoped, tag = 'scoped memory for tpu_custom_call.1']
    #allocation5 [shape = 'u8[16384]{0}', space=vmem, size = 0x4000, scoped, tag = 'output window, operand 0, single buffered']
    %9 = vsyncpa [#allocation3], 0
    %10 = vsyncpa [#allocation4], 0
    // Predicated region
    $region2: #{tpu_custom_call.1} parent=1 // pred_check
      _
    $region3: #{tpu_custom_call.1} parent=1 // pred_check_branch
      %12 = sbr.rel (0) target = $region5
    $region4: #{tpu_custom_call.1} parent=1 // pred_region
      _
    $region5: #{tpu_custom_call.1} parent=1 // pred_fallthru
      _
    // Predicated region
    $region6: #{tpu_custom_call.1} parent=1 // pred_check
      _
    $region7: #{tpu_custom_call.1} parent=1 // pred_check_branch
      %14 = sbr.rel (0) target = $region9
    $region8: #{tpu_custom_call.1} parent=1 // pred_region
      _
    $region9: #{tpu_custom_call.1} parent=1 // pred_fallthru
      _
    // Predicated region
    $region10: #{tpu_custom_call.1} parent=1 // pred_check
      _
    $region11: #{tpu_custom_call.1} parent=1 // pred_check_branch
      %16 = sbr.rel (0) target = $region13
    $region12: #{tpu_custom_call.1} parent=1 // pred_region
      _
    $region13: #{tpu_custom_call.1} parent=1 // pred_fallthru
      _
    // Predicated region
    $region14: #{tpu_custom_call.1} parent=1 // pred_check
      _
    $region15: #{tpu_custom_call.1} parent=1 // pred_check_branch
      %18 = sbr.rel (0) target = $region17
    $region16: #{tpu_custom_call.1} parent=1 // pred_region
      %20 = vsyncadd [#allocation3], 0
      %s21 = sshll.u32 %s3, 4
      %s22 = int_to_ptr.hbm [resolvable:$true] %s21
      %s23 = sshll.u32 [#allocation2], 4
      %s24 = int_to_ptr.vmem [resolvable:$true] %s23
      %29 = dma.hbm_to_vmem [thread:$0]  %s22, 512, %s24, [#allocation3], 128, 128, 8
    $region17: #{tpu_custom_call.1} parent=1 // pred_fallthru
      _
    // Predicated region
    $region18: #{tpu_custom_call.1} parent=1 // pred_check
      _
    $region19: #{tpu_custom_call.1} parent=1 // pred_check_branch
      %31 = sbr.rel (0) target = $region21
    $region20: #{tpu_custom_call.1} parent=1 // pred_region
      %33 = dma.done [#allocation3], 512
    $region21: #{tpu_custom_call.1} parent=1 // pred_fallthru
      _
    %v34 = vld [vmem:[%s0] sm:$0xff]
    %v35 = vld [vmem:[%s0 + $0x8] sm:$0xff]
    %v36 = vld [vmem:[%s0 + $0x10] sm:$0xff]
    %v37 = vld [vmem:[%s0 + $0x18] sm:$0xff]
    %v38 = vmul.f32 %v34, 0.125
    %v39 = vmul.f32 %v35, 0.125
    %v40 = vmul.f32 %v36, 0.125
    %v41 = vmul.f32 %v37, 0.125
    %v42 = vld [vmem:[%s1] sm:$0xff]
    %v43 = vld [vmem:[%s1 + $0x8] sm:$0xff]
    %v44 = vld [vmem:[%s1 + $0x10] sm:$0xff]
    %v45 = vld [vmem:[%s1 + $0x18] sm:$0xff]
    %v46 = vld [vmem:[%s1 + $0x20] sm:$0xff]
    %v47 = vld [vmem:[%s1 + $0x28] sm:$0xff]
    %v48 = vld [vmem:[%s1 + $0x30] sm:$0xff]
    %v49 = vld [vmem:[%s1 + $0x38] sm:$0xff]
    %v50 = vld [vmem:[%s2] sm:$0xff]
    %v51 = vld [vmem:[%s2 + $0x8] sm:$0xff]
    %v52 = vld [vmem:[%s2 + $0x10] sm:$0xff]
    %v53 = vld [vmem:[%s2 + $0x18] sm:$0xff]
    %v54 = vld [vmem:[%s2 + $0x20] sm:$0xff]
    %v55 = vld [vmem:[%s2 + $0x28] sm:$0xff]
    %v56 = vld [vmem:[%s2 + $0x30] sm:$0xff]
    %v57 = vld [vmem:[%s2 + $0x38] sm:$0xff]
    %vm58 = vcmask 261120
    %v60 = vsel %vm58, %v38, 0
    %v63 = vsel %vm58, %v42, 0
    %v66 = vsel %vm58, %v43, 0
    %68 = vmatpush.xpose.msra.mxu0 0.0
    %69 = vmatpush.xpose.msra.mxu0 0.0
    %70 = vmatpush.xpose.msra.mxu0 0.0
    %71 = vmatpush.xpose.msra.mxu0 0.0
    %72 = vmatpush.xpose.msra.mxu0 0.0
    %73 = vmatpush.xpose.msra.mxu0 0.0
    %74 = vmatpush.xpose.msra.mxu0 0.0
    %75 = vmatpush.xpose.msra.mxu0 0.0
    %76 = vmatpush.xpose.msra.mxu0 0.0
    %77 = vmatpush.xpose.msra.mxu0 0.0
    %78 = vmatpush.xpose.msra.mxu0 0.0
    %79 = vmatpush.xpose.msra.mxu0 0.0
    %80 = vmatpush.xpose.msra.mxu0 0.0
    %81 = vmatpush.xpose.msra.mxu0 0.0
    %82 = vmatpush.xpose.msra.mxu0 %v66
    %83 = vmatpush.xpose.msra.mxu0 %v63
    %84 = vmatmul.f32.gmra.mxu0 %v60
    %v85 = vpop.f32.mrf.mxu0
    %v86 = vadd.f32 0.0, %v85
    %87 = vdwg.mxu0
    %v89 = vsel %vm58, %v39, 0
    %v92 = vsel %vm58, %v44, 0
    %v95 = vsel %vm58, %v45, 0
    %97 = vmatpush.xpose.msra.mxu0 0.0
    %98 = vmatpush.xpose.msra.mxu0 0.0
    %99 = vmatpush.xpose.msra.mxu0 0.0
    %100 = vmatpush.xpose.msra.mxu0 0.0
    %101 = vmatpush.xpose.msra.mxu0 0.0
    %102 = vmatpush.xpose.msra.mxu0 0.0
    %103 = vmatpush.xpose.msra.mxu0 0.0
    %104 = vmatpush.xpose.msra.mxu0 0.0
    %105 = vmatpush.xpose.msra.mxu0 0.0
    %106 = vmatpush.xpose.msra.mxu0 0.0
    %107 = vmatpush.xpose.msra.mxu0 0.0
    %108 = vmatpush.xpose.msra.mxu0 0.0
    %109 = vmatpush.xpose.msra.mxu0 0.0
    %110 = vmatpush.xpose.msra.mxu0 0.0
    %111 = vmatpush.xpose.msra.mxu0 %v95
    %112 = vmatpush.xpose.msra.mxu0 %v92
    %113 = vmatmul.f32.gmra.mxu0 %v89
    %v114 = vpop.f32.mrf.mxu0
    %v115 = vadd.f32 0.0, %v114
    %116 = vdwg.mxu0
    %v118 = vsel %vm58, %v40, 0
    %v121 = vsel %vm58, %v46, 0
    %v124 = vsel %vm58, %v47, 0
    %126 = vmatpush.xpose.msra.mxu0 0.0
    %127 = vmatpush.xpose.msra.mxu0 0.0
    %128 = vmatpush.xpose.msra.mxu0 0.0
    %129 = vmatpush.xpose.msra.mxu0 0.0
    %130 = vmatpush.xpose.msra.mxu0 0.0
    %131 = vmatpush.xpose.msra.mxu0 0.0
    %132 = vmatpush.xpose.msra.mxu0 0.0
    %133 = vmatpush.xpose.msra.mxu0 0.0
    %134 = vmatpush.xpose.msra.mxu0 0.0
    %135 = vmatpush.xpose.msra.mxu0 0.0
    %136 = vmatpush.xpose.msra.mxu0 0.0
    %137 = vmatpush.xpose.msra.mxu0 0.0
    %138 = vmatpush.xpose.msra.mxu0 0.0
    %139 = vmatpush.xpose.msra.mxu0 0.0
    %140 = vmatpush.xpose.msra.mxu0 %v124
    %141 = vmatpush.xpose.msra.mxu0 %v121
    %142 = vmatmul.f32.gmra.mxu0 %v118
    %v143 = vpop.f32.mrf.mxu0
    %v144 = vadd.f32 0.0, %v143
    %145 = vdwg.mxu0
    %v147 = vsel %vm58, %v41, 0
    %v150 = vsel %vm58, %v48, 0
    %v153 = vsel %vm58, %v49, 0
    %155 = vmatpush.xpose.msra.mxu0 0.0
    %156 = vmatpush.xpose.msra.mxu0 0.0
    %157 = vmatpush.xpose.msra.mxu0 0.0
    %158 = vmatpush.xpose.msra.mxu0 0.0
    %159 = vmatpush.xpose.msra.mxu0 0.0
    %160 = vmatpush.xpose.msra.mxu0 0.0
    %161 = vmatpush.xpose.msra.mxu0 0.0
    %162 = vmatpush.xpose.msra.mxu0 0.0
    %163 = vmatpush.xpose.msra.mxu0 0.0
    %164 = vmatpush.xpose.msra.mxu0 0.0
    %165 = vmatpush.xpose.msra.mxu0 0.0
    %166 = vmatpush.xpose.msra.mxu0 0.0
    %167 = vmatpush.xpose.msra.mxu0 0.0
    %168 = vmatpush.xpose.msra.mxu0 0.0
    %169 = vmatpush.xpose.msra.mxu0 %v153
    %170 = vmatpush.xpose.msra.mxu0 %v150
    %171 = vmatmul.f32.gmra.mxu0 %v147
    %v172 = vpop.f32.mrf.mxu0
    %v173 = vadd.f32 0.0, %v172
    %174 = vdwg.mxu0
    %vm175 = vcmask 130048
    %v176 = vsel %vm175, %v86, -inf
    %177 = vmax.xlane.f32.xlu0 %v176
    %v178 = vpop.xlane.xlu0 %177
    %v179 = vsel %vm175, %v115, -inf
    %180 = vmax.xlane.f32.xlu0 %v179
    %v181 = vpop.xlane.xlu0 %180
    %v182 = vsel %vm175, %v144, -inf
    %183 = vmax.xlane.f32.xlu0 %v182
    %v184 = vpop.xlane.xlu0 %183
    %v185 = vsel %vm175, %v173, -inf
    %186 = vmax.xlane.f32.xlu0 %v185
    %v187 = vpop.xlane.xlu0 %186
    %v188 = vsub.f32 %v86, %v178
    %v189 = vsub.f32 %v115, %v181
    %v190 = vsub.f32 %v144, %v184
    %v191 = vsub.f32 %v173, %v187
    %v192 = vmul.f32 %v188, 1.442695
    %v193 = vpow.pop %v192
    %v194 = vmul.f32 %v189, 1.442695
    %v195 = vpow.pop %v194
    %v196 = vmul.f32 %v190, 1.442695
    %v197 = vpow.pop %v196
    %v198 = vmul.f32 %v191, 1.442695
    %v199 = vpow.pop %v198
    %v200 = vsel %vm175, %v193, 0.0
    %201 = vadd.xlane.f32.xlu0 %v200
    %v202 = vpop.xlane.xlu0 %201
    %v203 = vsel %vm175, %v195, 0.0
    %204 = vadd.xlane.f32.xlu0 %v203
    %v205 = vpop.xlane.xlu0 %204
    %v206 = vsel %vm175, %v197, 0.0
    %207 = vadd.xlane.f32.xlu0 %v206
    %v208 = vpop.xlane.xlu0 %207
    %v209 = vsel %vm175, %v199, 0.0
    %210 = vadd.xlane.f32.xlu0 %v209
    %v211 = vpop.xlane.xlu0 %210
    %v212 = vrcp.pop %v202
    %v213 = vrcp.pop %v205
    %v214 = vrcp.pop %v208
    %v215 = vrcp.pop %v211
    %v216 = vmul.f32 %v212, 4.0
    %v217 = vmul.f32 %v213, 4.0
    %v218 = vmul.f32 %v214, 4.0
    %v219 = vmul.f32 %v215, 4.0
    %v220 = vld [vmem:[#allocation2] sm:$0xff]
    %v221 = vld [vmem:[#allocation2 + $0x8] sm:$0xff]
    %v222 = vld [vmem:[#allocation2 + $0x10] sm:$0xff]
    %v223 = vld [vmem:[#allocation2 + $0x18] sm:$0xff]
    %vm224 = vcmp.ge.f32.partialorder %v220, 0.75
    %vm225 = vcmp.ge.f32.partialorder %v221, 0.75
    %vm226 = vcmp.ge.f32.partialorder %v222, 0.75
    %vm227 = vcmp.ge.f32.partialorder %v223, 0.75
    %v228 = vmul.f32 %v193, %v216
    %v229 = vmul.f32 %v195, %v217
    %v230 = vmul.f32 %v197, %v218
    %v231 = vmul.f32 %v199, %v219
    %v232 = vsel %vm224, %v228, 0.0
    %v233 = vsel %vm225, %v229, 0.0
    %v234 = vsel %vm226, %v230, 0.0
    %v235 = vsel %vm227, %v231, 0.0
    %v237 = vsel %vm175, %v232, 0
    %239 = vmatpush.msra.mxu0 0.0
    %240 = vmatpush.msra.mxu0 0.0
    %241 = vmatpush.msra.mxu0 0.0
    %242 = vmatpush.msra.mxu0 0.0
    %243 = vmatpush.msra.mxu0 0.0
    %244 = vmatpush.msra.mxu0 0.0
    %245 = vmatpush.msra.mxu0 0.0
    %246 = vmatpush.msra.mxu0 0.0
    %247 = vmatpush.msra.mxu0 0.0
    %248 = vmatpush.msra.mxu0 0.0
    %249 = vmatpush.msra.mxu0 0.0
    %250 = vmatpush.msra.mxu0 0.0
    %251 = vmatpush.msra.mxu0 0.0
    %252 = vmatpush.msra.mxu0 0.0
    %253 = vmatpush.msra.mxu0 %v51
    %254 = vmatpush.msra.mxu0 %v50
    %255 = vmatmul.f32.gmra.mxu0 %v237
    %v256 = vpop.f32.mrf.mxu0
    %v257 = vadd.f32 0.0, %v256
    %258 = vdwg.mxu0
    %v260 = vsel %vm175, %v233, 0
    %262 = vmatpush.msra.mxu0 0.0
    %263 = vmatpush.msra.mxu0 0.0
    %264 = vmatpush.msra.mxu0 0.0
    %265 = vmatpush.msra.mxu0 0.0
    %266 = vmatpush.msra.mxu0 0.0
    %267 = vmatpush.msra.mxu0 0.0
    %268 = vmatpush.msra.mxu0 0.0
    %269 = vmatpush.msra.mxu0 0.0
    %270 = vmatpush.msra.mxu0 0.0
    %271 = vmatpush.msra.mxu0 0.0
    %272 = vmatpush.msra.mxu0 0.0
    %273 = vmatpush.msra.mxu0 0.0
    %274 = vmatpush.msra.mxu0 0.0
    %275 = vmatpush.msra.mxu0 0.0
    %276 = vmatpush.msra.mxu0 %v53
    %277 = vmatpush.msra.mxu0 %v52
    %278 = vmatmul.f32.gmra.mxu0 %v260
    %v279 = vpop.f32.mrf.mxu0
    %v280 = vadd.f32 0.0, %v279
    %281 = vdwg.mxu0
    %v283 = vsel %vm175, %v234, 0
    %285 = vmatpush.msra.mxu0 0.0
    %286 = vmatpush.msra.mxu0 0.0
    %287 = vmatpush.msra.mxu0 0.0
    %288 = vmatpush.msra.mxu0 0.0
    %289 = vmatpush.msra.mxu0 0.0
    %290 = vmatpush.msra.mxu0 0.0
    %291 = vmatpush.msra.mxu0 0.0
    %292 = vmatpush.msra.mxu0 0.0
    %293 = vmatpush.msra.mxu0 0.0
    %294 = vmatpush.msra.mxu0 0.0
    %295 = vmatpush.msra.mxu0 0.0
    %296 = vmatpush.msra.mxu0 0.0
    %297 = vmatpush.msra.mxu0 0.0
    %298 = vmatpush.msra.mxu0 0.0
    %299 = vmatpush.msra.mxu0 %v55
    %300 = vmatpush.msra.mxu0 %v54
    %301 = vmatmul.f32.gmra.mxu0 %v283
    %v302 = vpop.f32.mrf.mxu0
    %v303 = vadd.f32 0.0, %v302
    %304 = vdwg.mxu0
    %v306 = vsel %vm175, %v235, 0
    %308 = vmatpush.msra.mxu0 0.0
    %309 = vmatpush.msra.mxu0 0.0
    %310 = vmatpush.msra.mxu0 0.0
    %311 = vmatpush.msra.mxu0 0.0
    %312 = vmatpush.msra.mxu0 0.0
    %313 = vmatpush.msra.mxu0 0.0
    %314 = vmatpush.msra.mxu0 0.0
    %315 = vmatpush.msra.mxu0 0.0
    %316 = vmatpush.msra.mxu0 0.0
    %317 = vmatpush.msra.mxu0 0.0
    %318 = vmatpush.msra.mxu0 0.0
    %319 = vmatpush.msra.mxu0 0.0
    %320 = vmatpush.msra.mxu0 0.0
    %321 = vmatpush.msra.mxu0 0.0
    %322 = vmatpush.msra.mxu0 %v57
    %323 = vmatpush.msra.mxu0 %v56
    %324 = vmatmul.f32.gmra.mxu0 %v306
    %v325 = vpop.f32.mrf.mxu0
    %v326 = vadd.f32 0.0, %v325
    %327 = vdwg.mxu0
    %vm328 = vcmask 64512
    %329 = vst.msk [vmem:[#allocation5] sm:$0xff] %vm328, %v257
    %330 = vst.msk [vmem:[#allocation5 + $0x8] sm:$0xff] %vm328, %v280
    %331 = vst.msk [vmem:[#allocation5 + $0x10] sm:$0xff] %vm328, %v303
    %332 = vst.msk [vmem:[#allocation5 + $0x18] sm:$0xff] %vm328, %v326
    // Predicated region
    $region22: #{tpu_custom_call.1} parent=1 // pred_check
      _
    $region23: #{tpu_custom_call.1} parent=1 // pred_check_branch
      %334 = sbr.rel (0) target = $region25
    $region24: #{tpu_custom_call.1} parent=1 // pred_region
      %336 = vsyncadd [#allocation4], 0
      %s337 = sshll.u32 [#allocation5], 4
      %s338 = int_to_ptr.vmem [resolvable:$true] %s337
      %s339 = sshll.u32 %s4, 4
      %s340 = int_to_ptr.hbm [resolvable:$true] %s339
      %345 = dma.vmem_to_hbm [thread:$0]  %s338, 512, %s340, [#allocation4], 128, 128, 8
    $region25: #{tpu_custom_call.1} parent=1 // pred_fallthru
      _
    // Predicated region
    $region26: #{tpu_custom_call.1} parent=1 // pred_check
      _
    $region27: #{tpu_custom_call.1} parent=1 // pred_check_branch
      %347 = sbr.rel (0) target = $region29
    $region28: #{tpu_custom_call.1} parent=1 // pred_region
      %349 = dma.done [#allocation4], 512
    $region29: #{tpu_custom_call.1} parent=1 // pred_fallthru
      _
    %350 = vsyncpa [#allocation3], 1
    %351 = vsyncpa [#allocation4], 1

</llo_original>
